<compile_context>
chip_gen: v6e
topology: v6e:2x2x1
jax: 0.10.0
libtpu: 0.0.40
codegen_flags: <defaults>
</compile_context>

<pallas_src>
import jax
import jax.numpy as jnp
from jax.experimental import pallas as pl
from jax.experimental.pallas import tpu as pltpu


LANE = 128      # TPU lane width (hidden layers padded to this)
TB_MAX = 2048   # max batch rows per grid step (fits comfortably in scoped VMEM
                # on all of v5e/v6e/v7x; keeps grid >= 2 for large batches)


def _round_up(x: int, m: int) -> int:
    return ((x + m - 1) // m) * m


def _mlp_softmax_kernel(ret_ref, risk_ref,
                        w1r_ref, w1k_ref, b1_ref,
                        w2_ref, b2_ref,
                        w3_ref, b3_ref,
                        o_ref):
    """One batch tile of PortfolioOptimizer.allocation.

    h1 = relu(ret @ W1[:A] + risk @ W1[A:] + b1)        (fused concat)
    h2 = relu(h1 @ W2p + b2p)                            (lane-padded to 128)
    logits = h2 @ W3p + b3                               (N = A, narrow)
    out = softmax(logits, axis=1)                        (exact divide)
    """
    # bf16 cast happens in-kernel (inputs arrive f32 straight from HBM).
    ret = ret_ref[...].astype(jnp.bfloat16)
    rsk = risk_ref[...].astype(jnp.bfloat16)

    # Linear 1 (+ fused concat) + ReLU; f32 accumulation on the MXU.
    h1 = jnp.dot(ret, w1r_ref[...], preferred_element_type=jnp.float32)
    h1 = h1 + jnp.dot(rsk, w1k_ref[...], preferred_element_type=jnp.float32)
    h1 = jnp.maximum(h1 + b1_ref[...], 0.0)

    # Linear 2 + ReLU (output lane-padded to 128; padded cols are exact zeros).
    h2 = jnp.dot(h1.astype(jnp.bfloat16), w2_ref[...],
                 preferred_element_type=jnp.float32)
    h2 = jnp.maximum(h2 + b2_ref[...], 0.0)

    # Linear 3 (narrow N = A; padded rows of w3 are zero so they contribute 0).
    logits = jnp.dot(h2.astype(jnp.bfloat16), w3_ref[...],
                     preferred_element_type=jnp.float32)
    logits = logits + b3_ref[...]

    # Numerically-stable softmax over the asset axis (exact divide so each
    # row of portfolio weights sums to 1 at f32 precision).
    m = jnp.max(logits, axis=1, keepdims=True)
    e = jnp.exp(logits - m)
    denom = jnp.sum(e, axis=1, keepdims=True)
    o_ref[...] = (e / denom).astype(o_ref.dtype)


@jax.jit
def portfolio_optimizer_forward(returns, risks, params):
    """returns, risks: (B, A) f32. params: (w1,b1,w2,b2,w3,b3), weights (in,out)."""
    w1, b1, w2, b2, w3, b3 = params
    B, A = returns.shape
    H2 = w2.shape[1]                 # 64
    H2p = _round_up(H2, LANE)        # 128 (lane-dense hidden layer 2)

    # Batch tile: large enough to amortize per-step overhead, clamped so tiny
    # batches don't burn compute on padding. Multiple of 8 satisfies the
    # sublane constraint for the f32 blocks.
    TB = min(TB_MAX, _round_up(B, 8))
    grid = (pl.cdiv(B, TB),)

    # --- param prep (tiny, one-time): bf16 weights, layer-2 padded to 128 ---
    w1r = w1[:A].astype(jnp.bfloat16)                                   # (A, 128)
    w1k = w1[A:].astype(jnp.bfloat16)                                   # (A, 128)
    w2p = jnp.pad(w2, ((0, 0), (0, H2p - H2))).astype(jnp.bfloat16)     # (128, 128)
    w3p = jnp.pad(w3, ((0, H2p - H2), (0, 0))).astype(jnp.bfloat16)     # (128, A)
    b1f = b1.reshape(1, -1).astype(jnp.float32)                         # (1, 128)
    b2p = jnp.pad(b2.reshape(1, -1),
                  ((0, 0), (0, H2p - H2))).astype(jnp.float32)          # (1, 128)
    b3f = b3.reshape(1, -1).astype(jnp.float32)                         # (1, A)

    # Weights/biases: full block, constant index -> resident in VMEM across steps.
    resident = lambda arr: pl.BlockSpec(arr.shape, lambda i: (0,) * arr.ndim)

    out = pl.pallas_call(
        _mlp_softmax_kernel,
        out_shape=jax.ShapeDtypeStruct((B, A), jnp.float32),
        grid=grid,
        in_specs=[
            pl.BlockSpec((TB, A), lambda i: (i, 0)),     # returns tile (f32)
            pl.BlockSpec((TB, A), lambda i: (i, 0)),     # risks tile (f32)
            resident(w1r), resident(w1k), resident(b1f),
            resident(w2p), resident(b2p),
            resident(w3p), resident(b3f),
        ],
        out_specs=pl.BlockSpec((TB, A), lambda i: (i, 0)),   # narrow f32 output
        compiler_params=pltpu.CompilerParams(
            dimension_semantics=("parallel",)),          # shard batch over v7x TCs
    )(returns, risks, w1r, w1k, b1f, w2p, b2p, w3p, b3f)

    return out


def init_params(num_assets: int, key):
    """nn.Linear-style init: U(-1/sqrt(fan_in), +1/sqrt(fan_in)).

    Weights stored as (in, out) — transposed relative to PyTorch's (out, in) —
    so the kernel computes x @ W + b. Biases are 1-D like PyTorch.
    """
    dims = [(2 * num_assets, 128), (128, 64), (64, num_assets)]
    params = []
    for fan_in, fan_out in dims:
        key, kw, kb = jax.random.split(key, 3)
        bound = 1.0 / jnp.sqrt(jnp.float32(fan_in))
        w = jax.random.uniform(kw, (fan_in, fan_out), jnp.float32,
                               minval=-bound, maxval=bound)
        b = jax.random.uniform(kb, (fan_out,), jnp.float32,
                               minval=-bound, maxval=bound)
        params.extend([w, b])
    return tuple(params)


def _reference_forward(returns, risks, params):
    """Pure-JAX f32 reference of the PyTorch module."""
    w1, b1, w2, b2, w3, b3 = params
    x = jnp.concatenate([returns, risks], axis=1)
    h = jnp.maximum(x @ w1 + b1, 0.0)
    h = jnp.maximum(h @ w2 + b2, 0.0)
    return jax.nn.softmax(h @ w3 + b3, axis=1)


def _check(batch: int, num_assets: int, key):
    k_ret, k_risk, k_params = jax.random.split(key, 3)
    returns = jax.random.normal(k_ret, (batch, num_assets), jnp.float32)
    risks = jax.random.normal(k_risk, (batch, num_assets), jnp.float32)
    params = init_params(num_assets, k_params)

    alloc = jax.block_until_ready(portfolio_optimizer_forward(returns, risks, params))
    expected = _reference_forward(returns, risks, params)

    assert alloc.shape == (batch, num_assets)
    # Rows are exact-divide softmax -> sum to 1 at f32 precision.
    assert bool(jnp.all(jnp.abs(jnp.sum(alloc, axis=1) - 1.0) < 1e-4))
    # bf16 matmuls -> agree with f32 reference to ~1e-2 level.
    assert bool(jnp.all(jnp.abs(alloc - expected) < 3e-2))


if __name__ == "__main__":
    key = jax.random.PRNGKey(0)
    k_small, k_big = jax.random.split(key)

    # Small batch: exercises the TB clamp (TB = 8, single grid step).
    _check(batch=8, num_assets=10, key=k_small)

    # Larger batch: exercises TB=2048, a 2-step grid and a ragged last block.
    _check(batch=3000, num_assets=10, key=k_big)

    print("KERNEL_OK")
</pallas_src>

<mosaic_0001>
module attributes {stable_mosaic.version = 11 : i64} {
  func.func @_mlp_softmax_kernel(%arg0: i32, %arg1: memref<8x10xf32, #tpu.memory_space<vmem>>, %arg2: memref<8x10xf32, #tpu.memory_space<vmem>>, %arg3: memref<10x128xbf16, #tpu.memory_space<vmem>>, %arg4: memref<10x128xbf16, #tpu.memory_space<vmem>>, %arg5: memref<1x128xf32, #tpu.memory_space<vmem>>, %arg6: memref<128x128xbf16, #tpu.memory_space<vmem>>, %arg7: memref<1x128xf32, #tpu.memory_space<vmem>>, %arg8: memref<128x10xbf16, #tpu.memory_space<vmem>>, %arg9: memref<1x10xf32, #tpu.memory_space<vmem>>, %arg10: memref<8x10xf32, #tpu.memory_space<vmem>>) attributes {dimension_semantics = [#tpu.dimension_semantics<parallel>], iteration_bounds = array<i64: 1>, scalar_prefetch = 0 : i64, scratch_operands = 0 : i64, tpu.core_type = #tpu.core_type<tc>, window_params = [{transform_indices = @transform_0, window_bounds = array<i64: 8, 10>}, {transform_indices = @transform_1, window_bounds = array<i64: 8, 10>}, {pipeline_mode = #tpu.pipeline_mode<synchronous>, transform_indices = @transform_2, window_bounds = array<i64: 10, 128>}, {pipeline_mode = #tpu.pipeline_mode<synchronous>, transform_indices = @transform_3, window_bounds = array<i64: 10, 128>}, {pipeline_mode = #tpu.pipeline_mode<synchronous>, transform_indices = @transform_4, window_bounds = array<i64: 1, 128>}, {pipeline_mode = #tpu.pipeline_mode<synchronous>, transform_indices = @transform_5, window_bounds = array<i64: 128, 128>}, {pipeline_mode = #tpu.pipeline_mode<synchronous>, transform_indices = @transform_6, window_bounds = array<i64: 1, 128>}, {pipeline_mode = #tpu.pipeline_mode<synchronous>, transform_indices = @transform_7, window_bounds = array<i64: 128, 10>}, {pipeline_mode = #tpu.pipeline_mode<synchronous>, transform_indices = @transform_8, window_bounds = array<i64: 1, 10>}, {transform_indices = @transform_9, window_bounds = array<i64: 8, 10>}]} {
    %c0 = arith.constant 0 : index
    %c0_0 = arith.constant 0 : index
    %0 = vector.load %arg1[%c0, %c0_0] : memref<8x10xf32, #tpu.memory_space<vmem>>, vector<8x10xf32>
    %1 = arith.truncf %0 : vector<8x10xf32> to vector<8x10xbf16>
    %c0_1 = arith.constant 0 : index
    %c0_2 = arith.constant 0 : index
    %2 = vector.load %arg2[%c0_1, %c0_2] : memref<8x10xf32, #tpu.memory_space<vmem>>, vector<8x10xf32>
    %3 = arith.truncf %2 : vector<8x10xf32> to vector<8x10xbf16>
    %c0_3 = arith.constant 0 : index
    %c0_4 = arith.constant 0 : index
    %4 = vector.load %arg3[%c0_3, %c0_4] : memref<10x128xbf16, #tpu.memory_space<vmem>>, vector<10x128xbf16>
    %cst = arith.constant dense<0.000000e+00> : vector<8x128xf32>
    %5 = tpu.matmul %1, %4, %cst {dimension_numbers = #tpu.dot_dimension_numbers<[1], [0], [0], [1], [0, 0, 1, 1], [], []>} : vector<8x10xbf16>, vector<10x128xbf16>, vector<8x128xf32> -> vector<8x128xf32>
    %c0_5 = arith.constant 0 : index
    %c0_6 = arith.constant 0 : index
    %6 = vector.load %arg4[%c0_5, %c0_6] : memref<10x128xbf16, #tpu.memory_space<vmem>>, vector<10x128xbf16>
    %cst_7 = arith.constant dense<0.000000e+00> : vector<8x128xf32>
    %7 = tpu.matmul %3, %6, %cst_7 {dimension_numbers = #tpu.dot_dimension_numbers<[1], [0], [0], [1], [0, 0, 1, 1], [], []>} : vector<8x10xbf16>, vector<10x128xbf16>, vector<8x128xf32> -> vector<8x128xf32>
    %8 = arith.addf %5, %7 : vector<8x128xf32>
    %c0_8 = arith.constant 0 : index
    %c0_9 = arith.constant 0 : index
    %9 = vector.load %arg5[%c0_8, %c0_9] : memref<1x128xf32, #tpu.memory_space<vmem>>, vector<1x128xf32>
    %10 = vector.broadcast %9 : vector<1x128xf32> to vector<8x128xf32>
    %11 = arith.addf %8, %10 : vector<8x128xf32>
    %cst_10 = arith.constant 0.000000e+00 : f32
    %12 = vector.broadcast %cst_10 : f32 to vector<8x128xf32>
    %13 = arith.maximumf %11, %12 : vector<8x128xf32>
    %14 = arith.truncf %13 : vector<8x128xf32> to vector<8x128xbf16>
    %c0_11 = arith.constant 0 : index
    %c0_12 = arith.constant 0 : index
    %15 = vector.load %arg6[%c0_11, %c0_12] : memref<128x128xbf16, #tpu.memory_space<vmem>>, vector<128x128xbf16>
    %cst_13 = arith.constant dense<0.000000e+00> : vector<8x128xf32>
    %16 = tpu.matmul %14, %15, %cst_13 {dimension_numbers = #tpu.dot_dimension_numbers<[1], [0], [0], [1], [0, 0, 1, 1], [], []>} : vector<8x128xbf16>, vector<128x128xbf16>, vector<8x128xf32> -> vector<8x128xf32>
    %c0_14 = arith.constant 0 : index
    %c0_15 = arith.constant 0 : index
    %17 = vector.load %arg7[%c0_14, %c0_15] : memref<1x128xf32, #tpu.memory_space<vmem>>, vector<1x128xf32>
    %18 = vector.broadcast %17 : vector<1x128xf32> to vector<8x128xf32>
    %19 = arith.addf %16, %18 : vector<8x128xf32>
    %cst_16 = arith.constant 0.000000e+00 : f32
    %20 = vector.broadcast %cst_16 : f32 to vector<8x128xf32>
    %21 = arith.maximumf %19, %20 : vector<8x128xf32>
    %22 = arith.truncf %21 : vector<8x128xf32> to vector<8x128xbf16>
    %c0_17 = arith.constant 0 : index
    %c0_18 = arith.constant 0 : index
    %23 = vector.load %arg8[%c0_17, %c0_18] : memref<128x10xbf16, #tpu.memory_space<vmem>>, vector<128x10xbf16>
    %cst_19 = arith.constant dense<0.000000e+00> : vector<8x10xf32>
    %24 = tpu.matmul %22, %23, %cst_19 {dimension_numbers = #tpu.dot_dimension_numbers<[1], [0], [0], [1], [0, 0, 1, 1], [], []>} : vector<8x128xbf16>, vector<128x10xbf16>, vector<8x10xf32> -> vector<8x10xf32>
    %c0_20 = arith.constant 0 : index
    %c0_21 = arith.constant 0 : index
    %25 = vector.load %arg9[%c0_20, %c0_21] : memref<1x10xf32, #tpu.memory_space<vmem>>, vector<1x10xf32>
    %26 = vector.broadcast %25 : vector<1x10xf32> to vector<8x10xf32>
    %27 = arith.addf %24, %26 : vector<8x10xf32>
    %cst_22 = arith.constant dense<0xFF800000> : vector<8xf32>
    %28 = vector.multi_reduction <maximumf>, %27, %cst_22 [1] : vector<8x10xf32> to vector<8xf32>
    %29 = vector.shape_cast %28 : vector<8xf32> to vector<8x1xf32>
    %30 = vector.broadcast %29 : vector<8x1xf32> to vector<8x10xf32>
    %31 = arith.subf %27, %30 : vector<8x10xf32>
    %32 = math.exp %31 : vector<8x10xf32>
    %cst_23 = arith.constant dense<0.000000e+00> : vector<8xf32>
    %33 = vector.multi_reduction <add>, %32, %cst_23 [1] : vector<8x10xf32> to vector<8xf32>
    %34 = vector.shape_cast %33 : vector<8xf32> to vector<8x1xf32>
    %35 = vector.broadcast %34 : vector<8x1xf32> to vector<8x10xf32>
    %36 = arith.divf %32, %35 : vector<8x10xf32>
    %c0_24 = arith.constant 0 : index
    %c0_25 = arith.constant 0 : index
    %37 = vector.load %arg10[%c0_24, %c0_25] : memref<8x10xf32, #tpu.memory_space<vmem>>, vector<8x10xf32>
    tpu.vector_store %arg10[%c0_24, %c0_25], %36 {strides = array<i32>} : memref<8x10xf32, #tpu.memory_space<vmem>>, vector<8x10xf32>,
    return
  }
  func.func @transform_0(%arg0: i32) -> (i32, i32) {
    %c0_i32 = arith.constant 0 : i32
    %c0_i32_0 = arith.constant 0 : i32
    return %arg0, %c0_i32 : i32, i32
  }
  func.func @transform_1(%arg0: i32) -> (i32, i32) {
    %c0_i32 = arith.constant 0 : i32
    %c0_i32_0 = arith.constant 0 : i32
    return %arg0, %c0_i32 : i32, i32
  }
  func.func @transform_2(%arg0: i32) -> (i32, i32) {
    %c0_i32 = arith.constant 0 : i32
    %c0_i32_0 = arith.constant 0 : i32
    %c0_i32_1 = arith.constant 0 : i32
    return %c0_i32, %c0_i32_0 : i32, i32
  }
  func.func @transform_3(%arg0: i32) -> (i32, i32) {
    %c0_i32 = arith.constant 0 : i32
    %c0_i32_0 = arith.constant 0 : i32
    %c0_i32_1 = arith.constant 0 : i32
    return %c0_i32, %c0_i32_0 : i32, i32
  }
  func.func @transform_4(%arg0: i32) -> (i32, i32) {
    %c0_i32 = arith.constant 0 : i32
    %c0_i32_0 = arith.constant 0 : i32
    %c0_i32_1 = arith.constant 0 : i32
    return %c0_i32, %c0_i32_0 : i32, i32
  }
  func.func @transform_5(%arg0: i32) -> (i32, i32) {
    %c0_i32 = arith.constant 0 : i32
    %c0_i32_0 = arith.constant 0 : i32
    %c0_i32_1 = arith.constant 0 : i32
    return %c0_i32, %c0_i32_0 : i32, i32
  }
  func.func @transform_6(%arg0: i32) -> (i32, i32) {
    %c0_i32 = arith.constant 0 : i32
    %c0_i32_0 = arith.constant 0 : i32
    %c0_i32_1 = arith.constant 0 : i32
    return %c0_i32, %c0_i32_0 : i32, i32
  }
  func.func @transform_7(%arg0: i32) -> (i32, i32) {
    %c0_i32 = arith.constant 0 : i32
    %c0_i32_0 = arith.constant 0 : i32
    %c0_i32_1 = arith.constant 0 : i32
    return %c0_i32, %c0_i32_0 : i32, i32
  }
  func.func @transform_8(%arg0: i32) -> (i32, i32) {
    %c0_i32 = arith.constant 0 : i32
    %c0_i32_0 = arith.constant 0 : i32
    %c0_i32_1 = arith.constant 0 : i32
    return %c0_i32, %c0_i32_0 : i32, i32
  }
  func.func @transform_9(%arg0: i32) -> (i32, i32) {
    %c0_i32 = arith.constant 0 : i32
    %c0_i32_0 = arith.constant 0 : i32
    return %arg0, %c0_i32 : i32, i32
  }
}

</mosaic_0001>

<llo_original>
// kernel: portfolio_optimizer_forward.1
$region0: #{portfolio_optimizer_forward.1}
  #allocation0 [shape = 'u32[]', space=smem, size = 0x4, offset = 0x4, fixed_abs, tag = 'smem constant byte address 0x4 - core index']
  #allocation1 [shape = 'u32[144,128]{1,0:T(1,128)}', space=vmem, size = 0x12000, scoped, tag = 'internal scratch']
  %s0 = inlined_call_operand.vmem [shape: f32[8,10], index: 0, kind: input, shape index: {}]
  %s1 = inlined_call_operand.vmem [shape: f32[8,10], index: 1, kind: input, shape index: {}]
  %s2 = inlined_call_operand.vmem [shape: bf16[10,128], index: 2, kind: input, shape index: {}]
  %s3 = inlined_call_operand.vmem [shape: bf16[10,128], index: 3, kind: input, shape index: {}]
  %s4 = inlined_call_operand.vmem [shape: f32[1,128], index: 4, kind: input, shape index: {}]
  %s5 = inlined_call_operand.vmem [shape: bf16[128,128], index: 5, kind: input, shape index: {}]
  %s6 = inlined_call_operand.vmem [shape: f32[1,128], index: 6, kind: input, shape index: {}]
  %s7 = inlined_call_operand.vmem [shape: bf16[128,10], index: 7, kind: input, shape index: {}]
  %s8 = inlined_call_operand.vmem [shape: f32[1,10], index: 8, kind: input, shape index: {}]
  %s9 = inlined_call_operand.hbm [shape: f32[8,10], index: 9, kind: output, shape index: {}]
  %s10 = sld [smem:[#allocation0]]
  $region46: #{portfolio_optimizer_forward.1} parent=0
    _
  %s12 = ssub.s32 1, %s10
  %s13 = scalar_select 0, %s12, %s10
  $region1: #{portfolio_optimizer_forward.1} parent=0
    #allocation2 [shape = 'u8[4096]{0}', space=vmem, size = 0x1000, scoped, tag = 'output window, operand 0, single buffered']
    #allocation3 [shape = 's32[1]{0}', space=sflag, size = 0x4, scoped, tag = 'scoped memory for portfolio_optimizer_forward.1']
    %14 = vsyncpa [#allocation3], 0
    // Predicated region
    $region2: #{portfolio_optimizer_forward.1} parent=1 // pred_check
      _
    $region3: #{portfolio_optimizer_forward.1} parent=1 // pred_check_branch
      %16 = sbr.rel (0) target = $region5
    $region4: #{portfolio_optimizer_forward.1} parent=1 // pred_region
      _
    $region5: #{portfolio_optimizer_forward.1} parent=1 // pred_fallthru
      _
    // Predicated region
    $region6: #{portfolio_optimizer_forward.1} parent=1 // pred_check
      _
    $region7: #{portfolio_optimizer_forward.1} parent=1 // pred_check_branch
      %18 = sbr.rel (0) target = $region9
    $region8: #{portfolio_optimizer_forward.1} parent=1 // pred_region
      _
    $region9: #{portfolio_optimizer_forward.1} parent=1 // pred_fallthru
      _
    // Predicated region
    $region10: #{portfolio_optimizer_forward.1} parent=1 // pred_check
      _
    $region11: #{portfolio_optimizer_forward.1} parent=1 // pred_check_branch
      %20 = sbr.rel (0) target = $region13
    $region12: #{portfolio_optimizer_forward.1} parent=1 // pred_region
      _
    $region13: #{portfolio_optimizer_forward.1} parent=1 // pred_fallthru
      _
    // Predicated region
    $region14: #{portfolio_optimizer_forward.1} parent=1 // pred_check
      _
    $region15: #{portfolio_optimizer_forward.1} parent=1 // pred_check_branch
      %22 = sbr.rel (0) target = $region17
    $region16: #{portfolio_optimizer_forward.1} parent=1 // pred_region
      _
    $region17: #{portfolio_optimizer_forward.1} parent=1 // pred_fallthru
      _
    // Predicated region
    $region18: #{portfolio_optimizer_forward.1} parent=1 // pred_check
      _
    $region19: #{portfolio_optimizer_forward.1} parent=1 // pred_check_branch
      %24 = sbr.rel (0) target = $region21
    $region20: #{portfolio_optimizer_forward.1} parent=1 // pred_region
      _
    $region21: #{portfolio_optimizer_forward.1} parent=1 // pred_fallthru
      _
    // Predicated region
    $region22: #{portfolio_optimizer_forward.1} parent=1 // pred_check
      _
    $region23: #{portfolio_optimizer_forward.1} parent=1 // pred_check_branch
      %26 = sbr.rel (0) target = $region25
    $region24: #{portfolio_optimizer_forward.1} parent=1 // pred_region
      _
    $region25: #{portfolio_optimizer_forward.1} parent=1 // pred_fallthru
      _
    // Predicated region
    $region26: #{portfolio_optimizer_forward.1} parent=1 // pred_check
      _
    $region27: #{portfolio_optimizer_forward.1} parent=1 // pred_check_branch
      %28 = sbr.rel (0) target = $region29
    $region28: #{portfolio_optimizer_forward.1} parent=1 // pred_region
      _
    $region29: #{portfolio_optimizer_forward.1} parent=1 // pred_fallthru
      _
    // Predicated region
    $region30: #{portfolio_optimizer_forward.1} parent=1 // pred_check
      _
    $region31: #{portfolio_optimizer_forward.1} parent=1 // pred_check_branch
      %30 = sbr.rel (0) target = $region33
    $region32: #{portfolio_optimizer_forward.1} parent=1 // pred_region
      _
    $region33: #{portfolio_optimizer_forward.1} parent=1 // pred_fallthru
      _
    // Predicated region
    $region34: #{portfolio_optimizer_forward.1} parent=1 // pred_check
      _
    $region35: #{portfolio_optimizer_forward.1} parent=1 // pred_check_branch
      %32 = sbr.rel (0) target = $region37
    $region36: #{portfolio_optimizer_forward.1} parent=1 // pred_region
      _
    $region37: #{portfolio_optimizer_forward.1} parent=1 // pred_fallthru
      _
    %v34 = vld [vmem:[%s0] sm:$0xff]
    %v35 = vpack.c.bf16 %v34, %v34
    %v36 = vld [vmem:[%s1] sm:$0xff]
    %v37 = vpack.c.bf16 %v36, %v36
    %v38 = vld [vmem:[%s2] sm:$0xf]
    %v39 = vld [vmem:[%s2 + $0x4] sm:$0x1]
    %v40 = vld [vmem:[%s3] sm:$0xf]
    %v41 = vld [vmem:[%s3 + $0x4] sm:$0x1]
    %v44 = vunpack.c.l.b16 %v40
    %v45 = vunpack.c.l.b16 %v41
    %v46 = vpack.c.b16 %v45, %v44
    %vm47 = vcmask 80896
    %v49 = vsel %vm47, %v37, 0
    %vm51 = vcmask 1044480
    %v53 = vsel %vm51, %v46, 0
    %55 = vmatprep.subr.bf16.mxu0 0
    %56 = vmatpush1.bf16.msra.mxu0 0
    %57 = vmatprep.subr.bf16.mxu0 0
    %58 = vmatpush1.bf16.msra.mxu0 0
    %59 = vmatprep.subr.bf16.mxu0 0
    %60 = vmatpush1.bf16.msra.mxu0 0
    %61 = vmatprep.subr.bf16.mxu0 0
    %62 = vmatpush1.bf16.msra.mxu0 0
    %63 = vmatprep.subr.bf16.mxu0 0
    %64 = vmatpush1.bf16.msra.mxu0 0
    %65 = vmatprep.subr.bf16.mxu0 0
    %66 = vmatpush1.bf16.msra.mxu0 0
    %67 = vmatprep.subr.bf16.mxu0 0
    %68 = vmatpush1.bf16.msra.mxu0 0
    %69 = vmatprep.subr.bf16.mxu0 0
    %70 = vmatpush1.bf16.msra.mxu0 %v53
    %71 = vmatprep.subr.bf16.mxu0 0
    %72 = vmatpush2.bf16.msra.mxu0 0
    %73 = vmatprep.subr.bf16.mxu0 0
    %74 = vmatpush2.bf16.msra.mxu0 0
    %75 = vmatprep.subr.bf16.mxu0 0
    %76 = vmatpush2.bf16.msra.mxu0 0
    %77 = vmatprep.subr.bf16.mxu0 0
    %78 = vmatpush2.bf16.msra.mxu0 0
    %79 = vmatprep.subr.bf16.mxu0 0
    %80 = vmatpush2.bf16.msra.mxu0 0
    %81 = vmatprep.subr.bf16.mxu0 0
    %82 = vmatpush2.bf16.msra.mxu0 0
    %83 = vmatprep.subr.bf16.mxu0 0
    %84 = vmatpush2.bf16.msra.mxu0 0
    %85 = vmatprep.subr.bf16.mxu0 0
    %86 = vmatpush2.bf16.msra.mxu0 0
    %87 = vmatprep.mubr.bf16.mxu0 0
    %88 = vmatmul.mubr.bf16.gmra.mxu0 %v49
    %v89 = vpop.f32.mrf.mxu0
    %v90 = vadd.f32 0.0, %v89
    %v91 = vpop.f32.mrf.mxu0
    %v92 = vpop.f32.mrf.mxu0
    %v93 = vpop.f32.mrf.mxu0
    %94 = vdwg.mxu0
    %v97 = vunpack.c.l.b16 %v38
    %v98 = vunpack.c.l.b16 %v39
    %v99 = vpack.c.b16 %v98, %v97
    %v101 = vsel %vm47, %v35, 0
    %v104 = vsel %vm51, %v99, 0
    %106 = vmatprep.subr.bf16.mxu0 0
    %107 = vmatpush1.bf16.msra.mxu0 0
    %108 = vmatprep.subr.bf16.mxu0 0
    %109 = vmatpush1.bf16.msra.mxu0 0
    %110 = vmatprep.subr.bf16.mxu0 0
    %111 = vmatpush1.bf16.msra.mxu0 0
    %112 = vmatprep.subr.bf16.mxu0 0
    %113 = vmatpush1.bf16.msra.mxu0 0
    %114 = vmatprep.subr.bf16.mxu0 0
    %115 = vmatpush1.bf16.msra.mxu0 0
    %116 = vmatprep.subr.bf16.mxu0 0
    %117 = vmatpush1.bf16.msra.mxu0 0
    %118 = vmatprep.subr.bf16.mxu0 0
    %119 = vmatpush1.bf16.msra.mxu0 0
    %120 = vmatprep.subr.bf16.mxu0 0
    %121 = vmatpush1.bf16.msra.mxu0 %v104
    %122 = vmatprep.subr.bf16.mxu0 0
    %123 = vmatpush2.bf16.msra.mxu0 0
    %124 = vmatprep.subr.bf16.mxu0 0
    %125 = vmatpush2.bf16.msra.mxu0 0
    %126 = vmatprep.subr.bf16.mxu0 0
    %127 = vmatpush2.bf16.msra.mxu0 0
    %128 = vmatprep.subr.bf16.mxu0 0
    %129 = vmatpush2.bf16.msra.mxu0 0
    %130 = vmatprep.subr.bf16.mxu0 0
    %131 = vmatpush2.bf16.msra.mxu0 0
    %132 = vmatprep.subr.bf16.mxu0 0
    %133 = vmatpush2.bf16.msra.mxu0 0
    %134 = vmatprep.subr.bf16.mxu0 0
    %135 = vmatpush2.bf16.msra.mxu0 0
    %136 = vmatprep.subr.bf16.mxu0 0
    %137 = vmatpush2.bf16.msra.mxu0 0
    %138 = vmatprep.mubr.bf16.mxu0 0
    %139 = vmatmul.mubr.bf16.gmra.mxu0 %v101
    %v140 = vpop.f32.mrf.mxu0
    %v141 = vadd.f32 %v90, %v140
    %v142 = vpop.f32.mrf.mxu0
    %v143 = vpop.f32.mrf.mxu0
    %v144 = vpop.f32.mrf.mxu0
    %145 = vdwg.mxu0
    %v146 = vld [vmem:[%s4] sm:$0x1]
    %v148 = vlaneseq
    %v149 = vshrl.u32 %v148, 7
    %v150 = vsub.s32 0, %v149
    %v151 = vrot.slane %v146, %v150
    %v153 = vadd.f32 %v141, %v151
    %v154 = vmax.f32 %v153, 0.0
    %v155 = vpack.c.bf16 %v154, %v154
    %v156 = vld [vmem:[%s5] sm:$0xf]
    %v157 = vld [vmem:[%s5 + $0x4] sm:$0xf]
    %v158 = vld [vmem:[%s5 + $0x8] sm:$0xf]
    %v159 = vld [vmem:[%s5 + $0xc] sm:$0xf]
    %v160 = vld [vmem:[%s5 + $0x10] sm:$0xf]
    %v161 = vld [vmem:[%s5 + $0x14] sm:$0xf]
    %v162 = vld [vmem:[%s5 + $0x18] sm:$0xf]
    %v163 = vld [vmem:[%s5 + $0x1c] sm:$0xf]
    %v164 = vld [vmem:[%s5 + $0x20] sm:$0xf]
    %v165 = vld [vmem:[%s5 + $0x24] sm:$0xf]
    %v166 = vld [vmem:[%s5 + $0x28] sm:$0xf]
    %v167 = vld [vmem:[%s5 + $0x2c] sm:$0xf]
    %v168 = vld [vmem:[%s5 + $0x30] sm:$0xf]
    %v169 = vld [vmem:[%s5 + $0x34] sm:$0xf]
    %v170 = vld [vmem:[%s5 + $0x38] sm:$0xf]
    %v171 = vld [vmem:[%s5 + $0x3c] sm:$0xf]
    %v172 = vld [vmem:[%s6] sm:$0x1]
    %v174 = vlaneseq
    %v175 = vshrl.u32 %v174, 7
    %v176 = vsub.s32 0, %v175
    %v177 = vrot.slane %v172, %v176
    %v195 = vunpack.c.l.b16 %v156
    %v196 = vunpack.c.l.b16 %v157
    %v197 = vunpack.c.l.b16 %v158
    %v198 = vunpack.c.l.b16 %v159
    %v199 = vunpack.c.l.b16 %v160
    %v200 = vunpack.c.l.b16 %v161
    %v201 = vunpack.c.l.b16 %v162
    %v202 = vunpack.c.l.b16 %v163
    %v203 = vunpack.c.l.b16 %v164
    %v204 = vunpack.c.l.b16 %v165
    %v205 = vunpack.c.l.b16 %v166
    %v206 = vunpack.c.l.b16 %v167
    %v207 = vunpack.c.l.b16 %v168
    %v208 = vunpack.c.l.b16 %v169
    %v209 = vunpack.c.l.b16 %v170
    %v210 = vunpack.c.l.b16 %v171
    %v211 = vpack.c.b16 %v196, %v195
    %v212 = vpack.c.b16 %v198, %v197
    %v213 = vpack.c.b16 %v200, %v199
    %v214 = vpack.c.b16 %v202, %v201
    %v215 = vpack.c.b16 %v204, %v203
    %v216 = vpack.c.b16 %v206, %v205
    %v217 = vpack.c.b16 %v208, %v207
    %v218 = vpack.c.b16 %v210, %v209
    %227 = vmatprep.subr.bf16.mxu0 0
    %228 = vmatpush1.bf16.msra.mxu0 %v218
    %229 = vmatprep.subr.bf16.mxu0 0
    %230 = vmatpush1.bf16.msra.mxu0 %v217
    %231 = vmatprep.subr.bf16.mxu0 0
    %232 = vmatpush1.bf16.msra.mxu0 %v216
    %233 = vmatprep.subr.bf16.mxu0 0
    %234 = vmatpush1.bf16.msra.mxu0 %v215
    %235 = vmatprep.subr.bf16.mxu0 0
    %236 = vmatpush1.bf16.msra.mxu0 %v214
    %237 = vmatprep.subr.bf16.mxu0 0
    %238 = vmatpush1.bf16.msra.mxu0 %v213
    %239 = vmatprep.subr.bf16.mxu0 0
    %240 = vmatpush1.bf16.msra.mxu0 %v212
    %241 = vmatprep.subr.bf16.mxu0 0
    %242 = vmatpush1.bf16.msra.mxu0 %v211
    %243 = vmatprep.subr.bf16.mxu0 0
    %244 = vmatpush2.bf16.msra.mxu0 0
    %245 = vmatprep.subr.bf16.mxu0 0
    %246 = vmatpush2.bf16.msra.mxu0 0
    %247 = vmatprep.subr.bf16.mxu0 0
    %248 = vmatpush2.bf16.msra.mxu0 0
    %249 = vmatprep.subr.bf16.mxu0 0
    %250 = vmatpush2.bf16.msra.mxu0 0
    %251 = vmatprep.subr.bf16.mxu0 0
    %252 = vmatpush2.bf16.msra.mxu0 0
    %253 = vmatprep.subr.bf16.mxu0 0
    %254 = vmatpush2.bf16.msra.mxu0 0
    %255 = vmatprep.subr.bf16.mxu0 0
    %256 = vmatpush2.bf16.msra.mxu0 0
    %257 = vmatprep.subr.bf16.mxu0 0
    %258 = vmatpush2.bf16.msra.mxu0 0
    %259 = vmatprep.mubr.bf16.mxu0 0
    %260 = vmatmul.mubr.bf16.gmra.mxu0 %v155
    %v261 = vpop.f32.mrf.mxu0
    %v262 = vadd.f32 %v177, %v261
    %v263 = vpop.f32.mrf.mxu0
    %v264 = vpop.f32.mrf.mxu0
    %v265 = vpop.f32.mrf.mxu0
    %266 = vdwg.mxu0
    %v267 = vmax.f32 %v262, 0.0
    %v268 = vpack.c.bf16 %v267, %v267
    %v269 = vld [vmem:[%s7] sm:$0xf]
    %v270 = vld [vmem:[%s7 + $0x4] sm:$0xf]
    %v271 = vld [vmem:[%s7 + $0x8] sm:$0xf]
    %v272 = vld [vmem:[%s7 + $0xc] sm:$0xf]
    %v273 = vld [vmem:[%s7 + $0x10] sm:$0xf]
    %v274 = vld [vmem:[%s7 + $0x14] sm:$0xf]
    %v275 = vld [vmem:[%s7 + $0x18] sm:$0xf]
    %v276 = vld [vmem:[%s7 + $0x1c] sm:$0xf]
    %v277 = vld [vmem:[%s7 + $0x20] sm:$0xf]
    %v278 = vld [vmem:[%s7 + $0x24] sm:$0xf]
    %v279 = vld [vmem:[%s7 + $0x28] sm:$0xf]
    %v280 = vld [vmem:[%s7 + $0x2c] sm:$0xf]
    %v281 = vld [vmem:[%s7 + $0x30] sm:$0xf]
    %v282 = vld [vmem:[%s7 + $0x34] sm:$0xf]
    %v283 = vld [vmem:[%s7 + $0x38] sm:$0xf]
    %v284 = vld [vmem:[%s7 + $0x3c] sm:$0xf]
    %v285 = vld [vmem:[%s8] sm:$0x1]
    %v287 = vlaneseq
    %v288 = vshrl.u32 %v287, 7
    %v289 = vsub.s32 0, %v288
    %v290 = vrot.slane %v285, %v289
    %v308 = vunpack.c.l.b16 %v269
    %v309 = vunpack.c.l.b16 %v270
    %v310 = vunpack.c.l.b16 %v271
    %v311 = vunpack.c.l.b16 %v272
    %v312 = vunpack.c.l.b16 %v273
    %v313 = vunpack.c.l.b16 %v274
    %v314 = vunpack.c.l.b16 %v275
    %v315 = vunpack.c.l.b16 %v276
    %v316 = vunpack.c.l.b16 %v277
    %v317 = vunpack.c.l.b16 %v278
    %v318 = vunpack.c.l.b16 %v279
    %v319 = vunpack.c.l.b16 %v280
    %v320 = vunpack.c.l.b16 %v281
    %v321 = vunpack.c.l.b16 %v282
    %v322 = vunpack.c.l.b16 %v283
    %v323 = vunpack.c.l.b16 %v284
    %v324 = vpack.c.b16 %v309, %v308
    %v325 = vpack.c.b16 %v311, %v310
    %v326 = vpack.c.b16 %v313, %v312
    %v327 = vpack.c.b16 %v315, %v314
    %v328 = vpack.c.b16 %v317, %v316
    %v329 = vpack.c.b16 %v319, %v318
    %v330 = vpack.c.b16 %v321, %v320
    %v331 = vpack.c.b16 %v323, %v322
    %340 = vmatprep.subr.bf16.mxu0 0
    %341 = vmatpush1.bf16.msra.mxu0 %v331
    %342 = vmatprep.subr.bf16.mxu0 0
    %343 = vmatpush1.bf16.msra.mxu0 %v330
    %344 = vmatprep.subr.bf16.mxu0 0
    %345 = vmatpush1.bf16.msra.mxu0 %v329
    %346 = vmatprep.subr.bf16.mxu0 0
    %347 = vmatpush1.bf16.msra.mxu0 %v328
    %348 = vmatprep.subr.bf16.mxu0 0
    %349 = vmatpush1.bf16.msra.mxu0 %v327
    %350 = vmatprep.subr.bf16.mxu0 0
    %351 = vmatpush1.bf16.msra.mxu0 %v326
    %352 = vmatprep.subr.bf16.mxu0 0
    %353 = vmatpush1.bf16.msra.mxu0 %v325
    %354 = vmatprep.subr.bf16.mxu0 0
    %355 = vmatpush1.bf16.msra.mxu0 %v324
    %356 = vmatprep.subr.bf16.mxu0 0
    %357 = vmatpush2.bf16.msra.mxu0 0
    %358 = vmatprep.subr.bf16.mxu0 0
    %359 = vmatpush2.bf16.msra.mxu0 0
    %360 = vmatprep.subr.bf16.mxu0 0
    %361 = vmatpush2.bf16.msra.mxu0 0
    %362 = vmatprep.subr.bf16.mxu0 0
    %363 = vmatpush2.bf16.msra.mxu0 0
    %364 = vmatprep.subr.bf16.mxu0 0
    %365 = vmatpush2.bf16.msra.mxu0 0
    %366 = vmatprep.subr.bf16.mxu0 0
    %367 = vmatpush2.bf16.msra.mxu0 0
    %368 = vmatprep.subr.bf16.mxu0 0
    %369 = vmatpush2.bf16.msra.mxu0 0
    %370 = vmatprep.subr.bf16.mxu0 0
    %371 = vmatpush2.bf16.msra.mxu0 0
    %372 = vmatprep.mubr.bf16.mxu0 0
    %373 = vmatmul.mubr.bf16.gmra.mxu0 %v268
    %v374 = vpop.f32.mrf.mxu0
    %v375 = vadd.f32 %v290, %v374
    %v376 = vpop.f32.mrf.mxu0
    %v377 = vpop.f32.mrf.mxu0
    %v378 = vpop.f32.mrf.mxu0
    %379 = vdwg.mxu0
    %v380 = vsel %vm47, %v375, -inf
    %381 = vmax.xlane.f32.xlu0 %v380
    %v382 = vpop.xlane.xlu0 %381
    %v383 = vsub.f32 %v375, %v382
    %v384 = vmul.f32 %v383, 1.442695
    %v385 = vpow.pop %v384
    %v386 = vsel %vm47, %v385, 0.0
    %387 = vadd.xlane.f32.xlu0 %v386
    %v388 = vpop.xlane.xlu0 %387
    %v389 = vrcp.pop %v388
    %v390 = vmul.f32 %v385, %v389
    %391 = vst.msk [vmem:[#allocation2] sm:$0xff] %vm47, %v390
    // Predicated region
    $region38: #{portfolio_optimizer_forward.1} parent=1 // pred_check
      _
    $region39: #{portfolio_optimizer_forward.1} parent=1 // pred_check_branch
      %393 = sbr.rel (0) target = $region41
    $region40: #{portfolio_optimizer_forward.1} parent=1 // pred_region
      %s395 = ssub.s32 128, 128
      %396 = vsyncadd [#allocation3], %s395
      %s398 = sshll.u32 [#allocation2], 4
      %s399 = int_to_ptr.vmem [resolvable:$true] %s398
      %401 = dma.vmem_to_hbm [thread:$0]  %s399, 128, %s9, [#allocation3]
    $region41: #{portfolio_optimizer_forward.1} parent=1 // pred_fallthru
      _
    // Predicated region
    $region42: #{portfolio_optimizer_forward.1} parent=1 // pred_check
      _
    $region43: #{portfolio_optimizer_forward.1} parent=1 // pred_check_branch
      %403 = sbr.rel (0) target = $region45
    $region44: #{portfolio_optimizer_forward.1} parent=1 // pred_region
      %404 = dma.done [#allocation3], 128
    $region45: #{portfolio_optimizer_forward.1} parent=1 // pred_fallthru
      _
    %405 = vsyncpa [#allocation3], 1

</llo_original>
